<compile_context>
chip_gen: v5e
topology: v5e:2x2
jax: 0.10.0
libtpu: 0.0.40
codegen_flags: <defaults>
</compile_context>

<pallas_src>
import numpy as np
import jax
import jax.numpy as jnp
from jax import lax
from jax.experimental import pallas as pl
from jax.experimental.pallas import tpu as pltpu

P = 128                        # lane-dense padded feature width for node arrays
BN = 8                         # destination-node block size (grid unit)
VMEM_LIMIT = 32 * 1024 * 1024  # explicit scoped-VMEM limit (safe on v5e/v6e/v7x)


def _lane_tile(x, rep):
    """(R, H) -> (R, H*rep) with column j -> x[:, j % H]  (rep is a power of 2)."""
    target = x.shape[-1] * rep
    y = x
    while y.shape[-1] < target:
        y = jnp.concatenate([y, y], axis=-1)
    return y


# =============================================================================
# Kernel 1: fused node projections.
#   emb = h @ W      (nan -> 0, columns pre-permuted to (dim, head) order)
#   h_l|h_r = emb @ [Al|Ar]      (a_l / a_r folded into one matrix)
#   res = h @ Wres + bres        (fused into the same MXU pass as W)
# =============================================================================
def _make_proj_kernel(residual):
    def kernel(*refs):
        if residual:
            h_ref, wcat_ref, acat_ref, bres_ref, emb_ref, hlr_ref, res_ref = refs
        else:
            h_ref, wcat_ref, acat_ref, emb_ref, hlr_ref = refs
        # W|Wres fused -> a single MXU pass over the node block.
        t = jnp.dot(h_ref[...], wcat_ref[...], preferred_element_type=jnp.float32)
        emb = t[:, :P]
        emb = jnp.where(jnp.isnan(emb), 0.0, emb)            # emb[isnan] = 0
        emb_ref[...] = emb
        # a_l|a_r fused into one (P, P) matrix: cols [0:H) = h_l, [H:2H) = h_r.
        hlr_ref[...] = jnp.dot(emb, acat_ref[...], preferred_element_type=jnp.float32)
        if residual:
            res_ref[...] = t[:, P:] + bres_ref[...]
    return kernel


def hgn_projection(h_pad, p):
    n_pad = h_pad.shape[0]
    residual = p["resid"]
    cw = 2 * P if residual else P
    node_blk = pl.BlockSpec((BN, P), lambda i: (i, 0))

    in_specs = [node_blk,
                pl.BlockSpec((P, cw), lambda i: (0, 0)),
                pl.BlockSpec((P, P), lambda i: (0, 0))]
    args = [h_pad, p["Wcat"], p["Acat"]]
    out_shape = [jax.ShapeDtypeStruct((n_pad, P), jnp.float32),
                 jax.ShapeDtypeStruct((n_pad, P), jnp.float32)]
    out_specs = [node_blk, node_blk]
    if residual:
        in_specs.append(pl.BlockSpec((1, P), lambda i: (0, 0)))
        args.append(p["bres"])
        out_shape.append(jax.ShapeDtypeStruct((n_pad, P), jnp.float32))
        out_specs.append(node_blk)

    return pl.pallas_call(
        _make_proj_kernel(residual),
        grid=(n_pad // BN,),
        in_specs=in_specs,
        out_specs=tuple(out_specs),
        out_shape=tuple(out_shape),
        compiler_params=pltpu.CompilerParams(
            dimension_semantics=("parallel",),
            vmem_limit_bytes=VMEM_LIMIT),
    )(*args)


# =============================================================================
# Kernel 2: per-destination-block message passing (block-vectorised).
#   Two-pass segmented softmax: (1) LeakyReLU logits + segment max, (2) exp and
#   a fused segment sum of denominator|numerator via one matmul against the
#   one-hot destination mask; then normalise, add residual, ELU, and store one
#   lane-dense (BN, 128) tile per grid step.
# =============================================================================
def _make_msg_kernel(EB, residual, apply_act, negative_slope):
    neg = float(negative_slope)
    NEG = np.float32(-1e30)

    def kernel(*refs):
        if residual:
            att_ref, esrc_ref, dst_ref, res_ref, out_ref = refs
        else:
            att_ref, esrc_ref, dst_ref, out_ref = refs
        H = att_ref.shape[-1]
        rep = P // H

        # ---- pass 1: logits + per-destination segment max --------------------
        att = att_ref[...]                                   # (EB,H) = hl[src]+hr[dst]+he
        att = jnp.where(att >= 0.0, att, neg * att)          # LeakyReLU
        dstl = dst_ref[...]                                  # (EB,1) local dst id (-1 = pad)
        node_ids = lax.broadcasted_iota(jnp.int32, (EB, BN), 1)
        m_bool = dstl == node_ids                            # (EB,BN) dst membership mask
        mf = m_bool.astype(jnp.float32)
        valid = dstl >= 0                                    # (EB,1)

        seg_max = jnp.max(jnp.where(m_bool[:, :, None], att[:, None, :], NEG),
                          axis=0)                            # (BN,H)
        att_max_e = jnp.dot(mf, seg_max,
                            preferred_element_type=jnp.float32)   # (EB,H) gather of seg max

        # ---- pass 2: exp + fused segment sums (numerator | denominator) ------
        pexp = jnp.exp(jnp.where(valid, att - att_max_e, NEG))   # (EB,H); pad slots -> 0
        p_full = _lane_tile(pexp, rep)                       # (EB,P): col d*H+h -> pexp[:,h]
        weighted = p_full * esrc_ref[...]                    # (EB,P) un-normalised messages
        cat = jnp.concatenate([weighted, pexp], axis=-1)     # (EB,P+H)
        seg = lax.dot_general(mf, cat, (((0,), (0,)), ((), ())),
                              preferred_element_type=jnp.float32)  # (BN,P+H) segment sums
        num, den = seg[:, :P], seg[:, P:]

        has_edge = den > 0.0                                 # zero in-degree -> 0 aggregation
        inv = jnp.where(has_edge, 1.0 / jnp.where(has_edge, den, 1.0), 0.0)
        out = num * _lane_tile(inv, rep)                     # (BN,P) softmax-normalised

        if residual:
            out = out + res_ref[...]
        if apply_act:                                        # ELU(alpha=1), inf-free form
            out = jnp.where(out > 0.0, out, jnp.exp(jnp.minimum(out, 0.0)) - 1.0)
        out_ref[...] = out
    return kernel


def hgn_conv_layer(h_pad, gb, p, negative_slope=0.2):
    """One SimpleHGNConv layer on lane-padded node features (n_pad, P)."""
    H = p["H"]
    residual, apply_act = p["resid"], p["act"]
    n_pad = h_pad.shape[0]
    G, EB = gb["dst_local"].shape[0], gb["dst_local"].shape[1]

    # ---- kernel 1: dense node projections ------------------------------------
    outs = hgn_projection(h_pad, p)
    emb, hlr = outs[0], outs[1]
    res = outs[2] if residual else None

    # ---- TypedLinear on the edge-type embedding (per-type, tiny: XLA glue) ---
    proj = jnp.einsum("td,tdo->to", p["edge_emb"], p["W_r"])
    proj = proj.reshape(-1, H, p["edge_dim"])
    h_e_type = jnp.sum(p["a_e"] * proj, axis=-1)             # (T, H)

    # ---- per-edge gathers into the per-block slot layout (XLA gather glue) ---
    # TODO(synk): at production E/N these become in-kernel jnp.take / DMA gathers.
    hl, hr = hlr[:, :H], hlr[:, H:2 * H]
    att_base = hl[gb["src_slot"]] + hr[gb["dst_slot"]] + h_e_type[gb["etype_slot"]]
    emb_src = emb[gb["src_slot"]]                            # (G, EB, P)

    # ---- kernel 2: segmented softmax + aggregation + residual + activation ---
    edge_blk = lambda w: pl.BlockSpec((None, EB, w), lambda b: (b, 0, 0))
    node_blk = pl.BlockSpec((BN, P), lambda b: (b, 0))
    in_specs = [edge_blk(H), edge_blk(P), edge_blk(1)]
    args = [att_base, emb_src, gb["dst_local"]]
    if residual:
        in_specs.append(node_blk)
        args.append(res)

    return pl.pallas_call(
        _make_msg_kernel(EB, residual, apply_act, negative_slope),
        grid=(G,),
        in_specs=in_specs,
        out_specs=node_blk,
        out_shape=jax.ShapeDtypeStruct((n_pad, P), jnp.float32),
        compiler_params=pltpu.CompilerParams(
            dimension_semantics=("parallel",),
            vmem_limit_bytes=VMEM_LIMIT),
    )(*args)


# =============================================================================
# Host graph preprocessing: dst-sort edges and pack them into fixed-size
# per-destination-node-block slot tables (padding slots have dst_local = -1).
# =============================================================================
def build_graph_blocks(src, dst, etype, n_nodes):
    src, dst, etype = (np.asarray(x, np.int64) for x in (src, dst, etype))
    order = np.argsort(dst, kind="stable")
    src_s, dst_s, et_s = src[order], dst[order], etype[order]

    n_pad = ((n_nodes + BN - 1) // BN) * BN
    G = n_pad // BN
    counts = np.bincount(dst_s // BN, minlength=G)
    EB = max(8, int(np.ceil(counts.max() / 8.0)) * 8) if counts.size else 8

    src_slot = np.zeros((G, EB), np.int32)
    dst_slot = np.zeros((G, EB), np.int32)
    et_slot = np.zeros((G, EB), np.int32)
    dst_local = np.full((G, EB, 1), -1, np.int32)
    starts = np.concatenate([[0], np.cumsum(counts)])
    for b in range(G):
        e0, e1 = int(starts[b]), int(starts[b + 1])
        k = e1 - e0
        src_slot[b, :k] = src_s[e0:e1]
        dst_slot[b, :k] = dst_s[e0:e1]
        et_slot[b, :k] = et_s[e0:e1]
        dst_local[b, :k, 0] = dst_s[e0:e1] - b * BN
    return dict(n_pad=n_pad,
                src_slot=jnp.asarray(src_slot),
                dst_slot=jnp.asarray(dst_slot),
                etype_slot=jnp.asarray(et_slot),
                dst_local=jnp.asarray(dst_local))


# =============================================================================
# Parameter init (deterministic synthetic, mirrors SimpleHGN.__init__ shapes)
# plus init-time re-layout / padding of the fused lane-dense kernel weights.
# =============================================================================
def _xavier(key, shape, fan_in, fan_out, gain=1.414):
    a = gain * np.sqrt(6.0 / (fan_in + fan_out))
    return jax.random.uniform(key, shape, jnp.float32, -a, a)


def init_params(key, edge_dim, num_etypes, in_dim, hidden_dim, num_classes,
                num_layers, heads):
    cfgs = [(in_dim, hidden_dim, heads[0], False, True)]
    for l in range(1, num_layers - 1):
        cfgs.append((hidden_dim * heads[l - 1], hidden_dim, heads[l], True, True))
    cfgs.append((hidden_dim * heads[-2], num_classes, heads[-1], True, False))

    layers = []
    for (fin, dout, H, resid, act) in cfgs:
        HD = dout * H
        assert fin <= P and HD <= P and P % H == 0
        key, *ks = jax.random.split(key, 9)
        W = _xavier(ks[1], (fin, HD), fin, HD)               # (head,dim)-flat cols as in torch
        a_l = _xavier(ks[3], (1, H, dout), H, dout)
        a_r = _xavier(ks[4], (1, H, dout), H, dout)

        # init-time re-layout: W columns permuted so emb comes out (dim, head)-flat
        j = np.arange(HD)
        h_of, d_of = j % H, j // H
        perm = (h_of * dout + d_of).astype(np.int32)
        W_dh = np.asarray(W)[:, perm]                        # (fin, HD)
        head_mask = (h_of[:, None] == np.arange(H)[None, :]).astype(np.float32)
        al_flat = np.asarray(a_l)[0].T.reshape(HD)           # value a_l[0,h,d] at j=d*H+h
        ar_flat = np.asarray(a_r)[0].T.reshape(HD)
        Al = head_mask * al_flat[:, None]                    # (HD, H)
        Ar = head_mask * ar_flat[:, None]

        # fused + lane-dense padded kernel weights ------------------------------
        acat = np.zeros((P, P), np.float32)
        acat[:HD, :H] = Al
        acat[:HD, H:2 * H] = Ar
        if resid:
            bound = 1.0 / np.sqrt(fin)
            Wres = jax.random.uniform(ks[6], (fin, HD), jnp.float32, -bound, bound)
            bres = jax.random.uniform(ks[7], (1, HD), jnp.float32, -bound, bound)
            wcat = np.zeros((P, 2 * P), np.float32)
            wcat[:fin, :HD] = W_dh
            wcat[:fin, P:P + HD] = np.asarray(Wres)
            bres_pad = np.zeros((1, P), np.float32)
            bres_pad[:, :HD] = np.asarray(bres)
        else:
            wcat = np.zeros((P, P), np.float32)
            wcat[:fin, :HD] = W_dh
            bres_pad = None

        layers.append(dict(
            fin=fin, dout=dout, H=H, HD=HD, act=act, resid=resid, edge_dim=edge_dim,
            edge_emb=_xavier(ks[0], (num_etypes, edge_dim), num_etypes, edge_dim),
            W_r=_xavier(ks[2], (num_etypes, edge_dim, edge_dim * H),
                        edge_dim, edge_dim * H),
            a_e=_xavier(ks[5], (1, H, edge_dim), H, edge_dim),
            Wcat=jnp.asarray(wcat), Acat=jnp.asarray(acat),
            bres=(jnp.asarray(bres_pad) if resid else None)))
    return layers


# =============================================================================
# Full SimpleHGN forward (Pallas) and a pure-NumPy reference for validation.
# =============================================================================
def simple_hgn_forward(h, gb, node_type, ntypes, layers, negative_slope=0.2):
    N = h.shape[0]
    h_pad = jnp.zeros((gb["n_pad"], P), jnp.float32).at[:N, :h.shape[1]].set(h)
    for p in layers:
        h_pad = hgn_conv_layer(h_pad, gb, p, negative_slope)
    h_out = h_pad[:N, :layers[-1]["HD"]]
    node_type = np.asarray(node_type)
    h_dict = {name: jax.nn.sigmoid(h_out[np.where(node_type == idx)[0]])
              for idx, name in enumerate(ntypes)}
    return h_out, h_dict


def _reference_forward(h, src, dst, etype, layers, negative_slope):
    """Pure NumPy reference of the SimpleHGNConv stack (pre-sigmoid)."""
    h = np.asarray(h, np.float32)
    for p in layers:
        fin, D, H, HD = p["fin"], p["dout"], p["H"], p["HD"]
        Wcat, Acat = np.asarray(p["Wcat"]), np.asarray(p["Acat"])
        W_dh, Al, Ar = Wcat[:fin, :HD], Acat[:HD, :H], Acat[:HD, H:2 * H]
        emb = h[:, :fin] @ W_dh
        emb = np.where(np.isnan(emb), 0.0, emb)
        hl, hr = emb @ Al, emb @ Ar
        proj = np.einsum("td,tdo->to", np.asarray(p["edge_emb"]), np.asarray(p["W_r"]))
        proj = proj.reshape(-1, H, p["edge_dim"])
        he_t = np.sum(np.asarray(p["a_e"]) * proj, axis=-1)
        att = hl[src] + hr[dst] + he_t[etype]
        att = np.where(att >= 0, att, negative_slope * att)
        out = np.zeros((h.shape[0], HD), np.float32)
        for n in range(h.shape[0]):
            e = np.where(dst == n)[0]
            if e.size == 0:
                continue
            a = att[e] - att[e].max(axis=0, keepdims=True)
            ea = np.exp(a)
            alpha = ea / ea.sum(axis=0, keepdims=True)
            out[n] = (np.tile(alpha, (1, D)) * emb[src[e]]).sum(axis=0)
        if p["resid"]:
            Wres = Wcat[:fin, P:P + HD]
            bres = np.asarray(p["bres"])[:, :HD]
            out = out + h[:, :fin] @ Wres + bres
        if p["act"]:
            out = np.where(out > 0, out, np.exp(np.minimum(out, 0.0)) - 1.0)
        h = out
    return h


# =============================================================================
if __name__ == "__main__":
    edge_dim, num_etypes = 8, 3
    in_dim, hidden_dim, num_classes = 16, 16, 8
    num_layers, heads = 2, [2, 1]
    negative_slope = 0.2

    N, E = 16, 40
    ntypes = ["user", "item"]
    node_type = np.array([0] * 10 + [1] * 6, np.int32)

    key = jax.random.PRNGKey(0)
    key, kh, ks, kd, ke = jax.random.split(key, 5)
    h = jax.random.normal(kh, (N, in_dim), jnp.float32)          # homogeneous node feats
    src = np.asarray(jax.random.randint(ks, (E,), 0, N))         # g.edges()[0]
    dst = np.asarray(jax.random.randint(kd, (E,), 0, N))         # g.edges()[1]
    etype = np.asarray(jax.random.randint(ke, (E,), 0, num_etypes))  # g.edata['_TYPE']

    gb = build_graph_blocks(src, dst, etype, N)
    layers = init_params(key, edge_dim, num_etypes, in_dim, hidden_dim,
                         num_classes, num_layers, heads)

    h_out, out = simple_hgn_forward(h, gb, node_type, ntypes, layers, negative_slope)
    out = jax.tree_util.tree_map(jax.block_until_ready, out)

    ref = _reference_forward(np.asarray(h), src, dst, etype, layers, negative_slope)
    diff = float(np.abs(np.asarray(h_out) - ref).max())
    assert np.allclose(np.asarray(h_out), ref, rtol=2e-2, atol=1e-2), diff
    assert out["user"].shape == (10, num_classes * heads[-1])
    assert out["item"].shape == (6, num_classes * heads[-1])
    print("KERNEL_OK")
</pallas_src>

<mosaic_0001>
module attributes {stable_mosaic.version = 11 : i64} {
  func.func @kernel(%arg0: i32, %arg1: memref<8x128xf32, #tpu.memory_space<vmem>>, %arg2: memref<128x128xf32, #tpu.memory_space<vmem>>, %arg3: memref<128x128xf32, #tpu.memory_space<vmem>>, %arg4: memref<8x128xf32, #tpu.memory_space<vmem>>, %arg5: memref<8x128xf32, #tpu.memory_space<vmem>>) attributes {dimension_semantics = [#tpu.dimension_semantics<parallel>], iteration_bounds = array<i64: 2>, scalar_prefetch = 0 : i64, scratch_operands = 0 : i64, tpu.core_type = #tpu.core_type<tc>, window_params = [{transform_indices = @transform_0, window_bounds = array<i64: 8, 128>}, {pipeline_mode = #tpu.pipeline_mode<synchronous>, transform_indices = @transform_1, window_bounds = array<i64: 128, 128>}, {pipeline_mode = #tpu.pipeline_mode<synchronous>, transform_indices = @transform_2, window_bounds = array<i64: 128, 128>}, {transform_indices = @transform_3, window_bounds = array<i64: 8, 128>}, {transform_indices = @transform_4, window_bounds = array<i64: 8, 128>}]} {
    %c0 = arith.constant 0 : index
    %c0_0 = arith.constant 0 : index
    %0 = vector.load %arg1[%c0, %c0_0] : memref<8x128xf32, #tpu.memory_space<vmem>>, vector<8x128xf32>
    %c0_1 = arith.constant 0 : index
    %c0_2 = arith.constant 0 : index
    %1 = vector.load %arg2[%c0_1, %c0_2] : memref<128x128xf32, #tpu.memory_space<vmem>>, vector<128x128xf32>
    %cst = arith.constant dense<0.000000e+00> : vector<8x128xf32>
    %2 = tpu.matmul %0, %1, %cst {dimension_numbers = #tpu.dot_dimension_numbers<[1], [0], [0], [1], [0, 0, 1, 1], [], []>} : vector<8x128xf32>, vector<128x128xf32>, vector<8x128xf32> -> vector<8x128xf32>
    %3 = arith.cmpf one, %2, %2 : vector<8x128xf32>
    %cst_3 = arith.constant 0.000000e+00 : f32
    %4 = vector.broadcast %cst_3 : f32 to vector<8x128xf32>
    %5 = arith.select %3, %4, %2 : vector<8x128xi1>, vector<8x128xf32>
    %c0_4 = arith.constant 0 : index
    %c0_5 = arith.constant 0 : index
    %6 = vector.load %arg4[%c0_4, %c0_5] : memref<8x128xf32, #tpu.memory_space<vmem>>, vector<8x128xf32>
    tpu.vector_store %arg4[%c0_4, %c0_5], %5 {strides = array<i32>} : memref<8x128xf32, #tpu.memory_space<vmem>>, vector<8x128xf32>,
    %c0_6 = arith.constant 0 : index
    %c0_7 = arith.constant 0 : index
    %7 = vector.load %arg3[%c0_6, %c0_7] : memref<128x128xf32, #tpu.memory_space<vmem>>, vector<128x128xf32>
    %cst_8 = arith.constant dense<0.000000e+00> : vector<8x128xf32>
    %8 = tpu.matmul %5, %7, %cst_8 {dimension_numbers = #tpu.dot_dimension_numbers<[1], [0], [0], [1], [0, 0, 1, 1], [], []>} : vector<8x128xf32>, vector<128x128xf32>, vector<8x128xf32> -> vector<8x128xf32>
    %c0_9 = arith.constant 0 : index
    %c0_10 = arith.constant 0 : index
    %9 = vector.load %arg5[%c0_9, %c0_10] : memref<8x128xf32, #tpu.memory_space<vmem>>, vector<8x128xf32>
    tpu.vector_store %arg5[%c0_9, %c0_10], %8 {strides = array<i32>} : memref<8x128xf32, #tpu.memory_space<vmem>>, vector<8x128xf32>,
    return
  }
  func.func @transform_0(%arg0: i32) -> (i32, i32) {
    %c0_i32 = arith.constant 0 : i32
    %c0_i32_0 = arith.constant 0 : i32
    return %arg0, %c0_i32 : i32, i32
  }
  func.func @transform_1(%arg0: i32) -> (i32, i32) {
    %c0_i32 = arith.constant 0 : i32
    %c0_i32_0 = arith.constant 0 : i32
    %c0_i32_1 = arith.constant 0 : i32
    return %c0_i32, %c0_i32_0 : i32, i32
  }
  func.func @transform_2(%arg0: i32) -> (i32, i32) {
    %c0_i32 = arith.constant 0 : i32
    %c0_i32_0 = arith.constant 0 : i32
    %c0_i32_1 = arith.constant 0 : i32
    return %c0_i32, %c0_i32_0 : i32, i32
  }
  func.func @transform_3(%arg0: i32) -> (i32, i32) {
    %c0_i32 = arith.constant 0 : i32
    %c0_i32_0 = arith.constant 0 : i32
    return %arg0, %c0_i32 : i32, i32
  }
  func.func @transform_4(%arg0: i32) -> (i32, i32) {
    %c0_i32 = arith.constant 0 : i32
    %c0_i32_0 = arith.constant 0 : i32
    return %arg0, %c0_i32 : i32, i32
  }
}

</mosaic_0001>

<llo_original>
// kernel: tpu_custom_call.1
$region0: #{tpu_custom_call.1}
  #allocation0 [shape = 'u32[]', space=smem, size = 0x4, offset = 0x4, fixed_abs, tag = 'smem constant byte address 0x4 - core index']
  #allocation1 [shape = 'u32[72,128]{1,0:T(1,128)}', space=vmem, size = 0x9000, scoped, tag = 'internal scratch']
  %s0 = inlined_call_operand.hbm [shape: f32[16,128], index: 0, kind: input, shape index: {}]
  %s1 = inlined_call_operand.hbm [shape: f32[128,128], index: 1, kind: input, shape index: {}]
  %s2 = inlined_call_operand.hbm [shape: f32[128,128], index: 2, kind: input, shape index: {}]
  %s3 = inlined_call_operand.hbm [shape: f32[16,128], index: 3, kind: output, shape index: {0}]
  %s4 = inlined_call_operand.hbm [shape: f32[16,128], index: 4, kind: output, shape index: {1}]
  %5 = xla_tuple %s3, %s4
  %s6 = sld [smem:[#allocation0]]
  $region65: #{tpu_custom_call.1} parent=0
    _
  %s8 = ssub.s32 1, %s6
  %s9 = scalar_select 0, %s8, %s6
  $region1: #{tpu_custom_call.1} parent=0
    #allocation2 [shape = 'u8[8192]{0}', space=vmem, size = 0x2000, scoped, tag = 'input window, operand 0']
    #allocation3 [shape = 's32[2]{0}', space=sflag, size = 0x8, scoped, tag = 'scoped memory for tpu_custom_call.1']
    #allocation4 [shape = 's32[2]{0}', space=sflag, size = 0x8, scoped, tag = 'scoped memory for tpu_custom_call.1']
    #allocation5 [shape = 'u8[65536]{0}', space=vmem, size = 0x10000, scoped, tag = 'input window, operand 1, single buffered']
    #allocation6 [shape = 's32[1]{0}', space=sflag, size = 0x4, scoped, tag = 'scoped memory for tpu_custom_call.1']
    #allocation7 [shape = 'u8[65536]{0}', space=vmem, size = 0x10000, scoped, tag = 'input window, operand 2, single buffered']
    #allocation8 [shape = 'u8[8192]{0}', space=vmem, size = 0x2000, scoped, tag = 'output window, operand 0']
    #allocation9 [shape = 'u8[8192]{0}', space=vmem, size = 0x2000, scoped, tag = 'output window, operand 1']
    #allocation10 [shape = 's32[2]{0}', space=sflag, size = 0x8, scoped, tag = 'scoped memory for tpu_custom_call.1']
    %10 = vsyncpa [#allocation3], 0
    %s11 = scalar_lea.sflag [#allocation3], 1
    %12 = vsyncpa %s11, 0
    %13 = vsyncpa [#allocation6], 0
    %14 = vsyncpa [#allocation4], 0
    %s15 = scalar_lea.sflag [#allocation4], 1
    %16 = vsyncpa %s15, 0
    %17 = vsyncpa [#allocation10], 0
    %s18 = scalar_lea.sflag [#allocation10], 1
    %19 = vsyncpa %s18, 0
    loop: start=0, step=1, limit=4
    $region2: #{tpu_custom_call.1} parent=1 // loop_pre_header
      _
    $region3: #{tpu_custom_call.1} parent=1 // loop_header
      %s21 = sphi 0, %s25
      %p22 = scmp.ge.s32.totalorder %s21, 4
      %s31 = sphi 0, %s33
      %s34 = sphi 0, %s31
      %s35 = sphi 0, %s34
      %s51 = sphi 0, %s35
      %s55 = sphi 0, %s55
      %s57 = sphi 0, %s55
      %s58 = sphi 0, %s57
      %s72 = sphi 0, %s58
      %s76 = sphi 0, %s76
      %s78 = sphi 0, %s76
      %s79 = sphi 0, %s78
      %s93 = sphi 0, %s79
      %s99 = sphi 0, %s101
      %s102 = sphi 0, %s99
      %s103 = sphi 0, %s102
      %s119 = sphi 0, %s103
      %s125 = sphi 0, %s127
      %s128 = sphi 0, %s125
      %s129 = sphi 0, %s128
      %s145 = sphi 0, %s129
    $region4: #{tpu_custom_call.1} parent=1 // loop_header_branch
      %24 = sbr.rel (%p22) target = $region8
    $region5: #{tpu_custom_call.1} parent=1 // loop_body
      %s26 = ssub.s32 %s21, 1
      %s27 = ssub.s32 %s21, 2
      %s28 = sadd.s32 %s21, 1
      %s29 = ssub.s32 %s21, %s28
      %p30 = scmp.eq.s32.totalorder %s29, 0
      %s32 = sadd.s32 %s31, 1
      %s33 = scalar_select %p30, %s31, %s32
      %p36 = pneg %p30
      %p37 = scmp.eq.s32.totalorder %s21, 1
      %p38 = por %p36, %p37
      %p39 = scmp.ne.s32.totalorder %s31, %s34
      %p40 = scmp.eq.s32.totalorder %s21, 0
      %p41 = por %p39, %p40
      %p42 = scmp.ne.s32.totalorder %s31, %s34
      %p43 = scmp.eq.s32.totalorder %s26, 1
      %p44 = por %p42, %p43
      %p45 = scmp.ne.s32.totalorder %s34, %s35
      %p46 = scmp.eq.s32.totalorder %s26, 0
      %p47 = por %p45, %p46
      %p48 = scmp.ne.s32.totalorder %s34, %s35
      %p49 = scmp.eq.s32.totalorder %s27, 1
      %p50 = por %p48, %p49
      %p52 = scmp.ne.s32.totalorder %s35, %s51
      %p53 = scmp.eq.s32.totalorder %s27, 0
      %p54 = por %p52, %p53
      %s56 = sadd.s32 %s55, 1
      %p59 = scmp.eq.s32.totalorder %s21, 1
      %p60 = scmp.ne.s32.totalorder %s55, %s57
      %p61 = scmp.eq.s32.totalorder %s21, 0
      %p62 = por %p60, %p61
      %p63 = scmp.ne.s32.totalorder %s55, %s57
      %p64 = scmp.eq.s32.totalorder %s26, 1
      %p65 = por %p63, %p64
      %p66 = scmp.ne.s32.totalorder %s57, %s58
      %p67 = scmp.eq.s32.totalorder %s26, 0
      %p68 = por %p66, %p67
      %p69 = scmp.ne.s32.totalorder %s57, %s58
      %p70 = scmp.eq.s32.totalorder %s27, 1
      %p71 = por %p69, %p70
      %p73 = scmp.ne.s32.totalorder %s58, %s72
      %p74 = scmp.eq.s32.totalorder %s27, 0
      %p75 = por %p73, %p74
      %s77 = sadd.s32 %s76, 1
      %p80 = scmp.eq.s32.totalorder %s21, 1
      %p81 = scmp.ne.s32.totalorder %s76, %s78
      %p82 = scmp.eq.s32.totalorder %s21, 0
      %p83 = por %p81, %p82
      %p84 = scmp.ne.s32.totalorder %s76, %s78
      %p85 = scmp.eq.s32.totalorder %s26, 1
      %p86 = por %p84, %p85
      %p87 = scmp.ne.s32.totalorder %s78, %s79
      %p88 = scmp.eq.s32.totalorder %s26, 0
      %p89 = por %p87, %p88
      %p90 = scmp.ne.s32.totalorder %s78, %s79
      %p91 = scmp.eq.s32.totalorder %s27, 1
      %p92 = por %p90, %p91
      %p94 = scmp.ne.s32.totalorder %s79, %s93
      %p95 = scmp.eq.s32.totalorder %s27, 0
      %p96 = por %p94, %p95
      %s97 = ssub.s32 %s21, %s28
      %p98 = scmp.eq.s32.totalorder %s97, 0
      %s100 = sadd.s32 %s99, 1
      %s101 = scalar_select %p98, %s99, %s100
      %p104 = pneg %p98
      %p105 = scmp.eq.s32.totalorder %s21, 1
      %p106 = por %p104, %p105
      %p107 = scmp.ne.s32.totalorder %s99, %s102
      %p108 = scmp.eq.s32.totalorder %s21, 0
      %p109 = por %p107, %p108
      %p110 = scmp.ne.s32.totalorder %s99, %s102
      %p111 = scmp.eq.s32.totalorder %s26, 1
      %p112 = por %p110, %p111
      %p113 = scmp.ne.s32.totalorder %s102, %s103
      %p114 = scmp.eq.s32.totalorder %s26, 0
      %p115 = por %p113, %p114
      %p116 = scmp.ne.s32.totalorder %s102, %s103
      %p117 = scmp.eq.s32.totalorder %s27, 1
      %p118 = por %p116, %p117
      %p120 = scmp.ne.s32.totalorder %s103, %s119
      %p121 = scmp.eq.s32.totalorder %s27, 0
      %p122 = por %p120, %p121
      %s123 = ssub.s32 %s21, %s28
      %p124 = scmp.eq.s32.totalorder %s123, 0
      %s126 = sadd.s32 %s125, 1
      %s127 = scalar_select %p124, %s125, %s126
      %p130 = pneg %p124
      %p131 = scmp.eq.s32.totalorder %s21, 1
      %p132 = por %p130, %p131
      %p133 = scmp.ne.s32.totalorder %s125, %s128
      %p134 = scmp.eq.s32.totalorder %s21, 0
      %p135 = por %p133, %p134
      %p136 = scmp.ne.s32.totalorder %s125, %s128
      %p137 = scmp.eq.s32.totalorder %s26, 1
      %p138 = por %p136, %p137
      %p139 = scmp.ne.s32.totalorder %s128, %s129
      %p140 = scmp.eq.s32.totalorder %s26, 0
      %p141 = por %p139, %p140
      %p142 = scmp.ne.s32.totalorder %s128, %s129
      %p143 = scmp.eq.s32.totalorder %s27, 1
      %p144 = por %p142, %p143
      %p146 = scmp.ne.s32.totalorder %s129, %s145
      %p147 = scmp.eq.s32.totalorder %s27, 0
      %p148 = por %p146, %p147
      %p149 = scmp.le.s32.totalorder 1, %s21
      %p150 = scmp.lt.s32.totalorder %s21, 3
      %p151 = pnand %p149, %p150
      %p152 = pneg %p151
      // Predicated region
      $region9: #{tpu_custom_call.1} parent=5 // pred_check
        _
      $region10: #{tpu_custom_call.1} parent=5 // pred_check_branch
        %154 = sbr.rel (%p151) target = $region12
      $region11: #{tpu_custom_call.1} parent=5 // pred_region
        %s155 = ssub.s32 %s21, 1
        // Predicated region
        $region13: #{tpu_custom_call.1} parent=11 // pred_check
          %p156 = pneg %p68
        $region14: #{tpu_custom_call.1} parent=11 // pred_check_branch
          %158 = sbr.rel (%p156) target = $region16
        $region15: #{tpu_custom_call.1} parent=11 // pred_region
          %160 = vsyncadd [#allocation6], 0
          %s161 = sshll.u32 %s1, 4
          %s162 = int_to_ptr.hbm [resolvable:$true] %s161
          %s163 = sshll.u32 [#allocation5], 4
          %s164 = int_to_ptr.vmem [resolvable:$true] %s163
          %169 = dma.hbm_to_vmem [thread:$0]  %s162, 2048, %s164, [#allocation6], 128, 128, 8
        $region16: #{tpu_custom_call.1} parent=11 // pred_fallthru
          _
        // Predicated region
        $region17: #{tpu_custom_call.1} parent=11 // pred_check
          %p170 = pneg %p89
        $region18: #{tpu_custom_call.1} parent=11 // pred_check_branch
          %172 = sbr.rel (%p170) target = $region20
        $region19: #{tpu_custom_call.1} parent=11 // pred_region
          %174 = vsyncadd [#allocation6], 0
          %s175 = sshll.u32 %s2, 4
          %s176 = int_to_ptr.hbm [resolvable:$true] %s175
          %s177 = sshll.u32 [#allocation7], 4
          %s178 = int_to_ptr.vmem [resolvable:$true] %s177
          %183 = dma.hbm_to_vmem [thread:$0]  %s176, 2048, %s178, [#allocation6], 128, 128, 8
        $region20: #{tpu_custom_call.1} parent=11 // pred_fallthru
          _
      $region12: #{tpu_custom_call.1} parent=5 // pred_fallthru
        _
      %p184 = scmp.lt.s32.totalorder %s21, 2
      // Predicated region
      $region21: #{tpu_custom_call.1} parent=5 // pred_check
        %p185 = pneg %p184
      $region22: #{tpu_custom_call.1} parent=5 // pred_check_branch
        %187 = sbr.rel (%p185) target = $region24
      $region23: #{tpu_custom_call.1} parent=5 // pred_region
        // Predicated region
        $region25: #{tpu_custom_call.1} parent=23 // pred_check
          %p188 = pneg %p41
        $region26: #{tpu_custom_call.1} parent=23 // pred_check_branch
          %190 = sbr.rel (%p188) target = $region28
        $region27: #{tpu_custom_call.1} parent=23 // pred_region
          %s191 = sand.u32 %s31, 1
          %s192 = scalar_lea.sflag [#allocation3], %s191
          %s193 = sand.u32 %s31, 1
          %s194 = smul.addr %s193, 8
          %s195 = scalar_lea.vmem [#allocation2], %s194
          %197 = vsyncadd %s192, 0
          %s198 = smul.addr %s21, 8
          %s199 = scalar_lea.hbm %s0, %s198
          %s201 = sshll.u32 %s199, 4
          %s202 = int_to_ptr.hbm [resolvable:$true] %s201
          %s203 = sshll.u32 %s195, 4
          %s204 = int_to_ptr.vmem [resolvable:$true] %s203
          %206 = dma.hbm_to_vmem [thread:$0]  %s202, 128, %s204, %s192
        $region28: #{tpu_custom_call.1} parent=23 // pred_fallthru
          _
      $region24: #{tpu_custom_call.1} parent=5 // pred_fallthru
        _
      %p207 = scmp.le.s32.totalorder 1, %s21
      %p208 = scmp.lt.s32.totalorder %s21, 3
      %p209 = pnand %p207, %p208
      %p210 = pneg %p209
      // Predicated region
      $region29: #{tpu_custom_call.1} parent=5 // pred_check
        _
      $region30: #{tpu_custom_call.1} parent=5 // pred_check_branch
        %212 = sbr.rel (%p209) target = $region32
      $region31: #{tpu_custom_call.1} parent=5 // pred_region
        %s213 = ssub.s32 %s21, 1
        %s214 = sand.u32 %s34, 1
        %s215 = scalar_lea.sflag [#allocation3], %s214
        %s216 = sand.u32 %s34, 1
        %s217 = smul.addr %s216, 8
        %s218 = scalar_lea.vmem [#allocation2], %s217
        // Predicated region
        $region33: #{tpu_custom_call.1} parent=31 // pred_check
          %p219 = pneg %p47
        $region34: #{tpu_custom_call.1} parent=31 // pred_check_branch
          %221 = sbr.rel (%p219) target = $region36
        $region35: #{tpu_custom_call.1} parent=31 // pred_region
          %223 = dma.done %s215, 128
        $region36: #{tpu_custom_call.1} parent=31 // pred_fallthru
          _
        // Predicated region
        $region37: #{tpu_custom_call.1} parent=31 // pred_check
          %p224 = pneg %p68
        $region38: #{tpu_custom_call.1} parent=31 // pred_check_branch
          %226 = sbr.rel (%p224) target = $region40
        $region39: #{tpu_custom_call.1} parent=31 // pred_region
          %228 = dma.done [#allocation6], 2048
        $region40: #{tpu_custom_call.1} parent=31 // pred_fallthru
          _
        // Predicated region
        $region41: #{tpu_custom_call.1} parent=31 // pred_check
          %p229 = pneg %p89
        $region42: #{tpu_custom_call.1} parent=31 // pred_check_branch
          %231 = sbr.rel (%p229) target = $region44
        $region43: #{tpu_custom_call.1} parent=31 // pred_region
          %233 = dma.done [#allocation6], 2048
        $region44: #{tpu_custom_call.1} parent=31 // pred_fallthru
          _
        %s234 = sand.u32 %s34, 1
        %s235 = scalar_lea.sflag [#allocation3], %s234
        %s236 = sand.u32 %s34, 1
        %s237 = smul.addr %s236, 8
        %s238 = scalar_lea.vmem [#allocation2], %s237
        %p239 = pneg %p47
        %p240 = pneg %p44
        %p241 = pneg %p68
        %p242 = pneg %p65
        %p243 = pneg %p89
        %p244 = pneg %p86
        %p245 = pneg %p115
        %p246 = pneg %p112
        %s247 = sand.u32 %s102, 1
        %s248 = scalar_lea.sflag [#allocation4], %s247
        %s249 = sand.u32 %s102, 1
        %s250 = smul.addr %s249, 8
        %s251 = scalar_lea.vmem [#allocation8], %s250
        %p252 = pneg %p141
        %p253 = pneg %p138
        %s254 = sand.u32 %s128, 1
        %s255 = scalar_lea.sflag [#allocation10], %s254
        %s256 = sand.u32 %s128, 1
        %s257 = smul.addr %s256, 8
        %s258 = scalar_lea.vmem [#allocation9], %s257
        %v259 = vld [vmem:[%s218] sm:$0xff]
        %v260 = vld [vmem:[#allocation5] sm:$0xff]
        %v261 = vld [vmem:[#allocation5 + $0x8] sm:$0xff]
        %v262 = vld [vmem:[#allocation5 + $0x10] sm:$0xff]
        %v263 = vld [vmem:[#allocation5 + $0x18] sm:$0xff]
        %v264 = vld [vmem:[#allocation5 + $0x20] sm:$0xff]
        %v265 = vld [vmem:[#allocation5 + $0x28] sm:$0xff]
        %v266 = vld [vmem:[#allocation5 + $0x30] sm:$0xff]
        %v267 = vld [vmem:[#allocation5 + $0x38] sm:$0xff]
        %v268 = vld [vmem:[#allocation5 + $0x40] sm:$0xff]
        %v269 = vld [vmem:[#allocation5 + $0x48] sm:$0xff]
        %v270 = vld [vmem:[#allocation5 + $0x50] sm:$0xff]
        %v271 = vld [vmem:[#allocation5 + $0x58] sm:$0xff]
        %v272 = vld [vmem:[#allocation5 + $0x60] sm:$0xff]
        %v273 = vld [vmem:[#allocation5 + $0x68] sm:$0xff]
        %v274 = vld [vmem:[#allocation5 + $0x70] sm:$0xff]
        %v275 = vld [vmem:[#allocation5 + $0x78] sm:$0xff]
        %276 = vmatpush.msra.mxu0 %v275
        %277 = vmatpush.msra.mxu0 %v274
        %278 = vmatpush.msra.mxu0 %v273
        %279 = vmatpush.msra.mxu0 %v272
        %280 = vmatpush.msra.mxu0 %v271
        %281 = vmatpush.msra.mxu0 %v270
        %282 = vmatpush.msra.mxu0 %v269
        %283 = vmatpush.msra.mxu0 %v268
        %284 = vmatpush.msra.mxu0 %v267
        %285 = vmatpush.msra.mxu0 %v266
        %286 = vmatpush.msra.mxu0 %v265
        %287 = vmatpush.msra.mxu0 %v264
        %288 = vmatpush.msra.mxu0 %v263
        %289 = vmatpush.msra.mxu0 %v262
        %290 = vmatpush.msra.mxu0 %v261
        %291 = vmatpush.msra.mxu0 %v260
        %292 = vmatmul.f32.gmra.mxu0 %v259
        %v293 = vpop.f32.mrf.mxu0
        %v294 = vadd.f32 0.0, %v293
        %295 = vdwg.mxu0
        %vm296 = vcmp.ne.f32.partialorder %v294, %v294
        %v297 = vsel %vm296, 0.0, %v294
        %298 = vst [vmem:[%s251] sm:$0xff] %v297
        %v299 = vld [vmem:[#allocation7] sm:$0xff]
        %v300 = vld [vmem:[#allocation7 + $0x8] sm:$0xff]
        %v301 = vld [vmem:[#allocation7 + $0x10] sm:$0xff]
        %v302 = vld [vmem:[#allocation7 + $0x18] sm:$0xff]
        %v303 = vld [vmem:[#allocation7 + $0x20] sm:$0xff]
        %v304 = vld [vmem:[#allocation7 + $0x28] sm:$0xff]
        %v305 = vld [vmem:[#allocation7 + $0x30] sm:$0xff]
        %v306 = vld [vmem:[#allocation7 + $0x38] sm:$0xff]
        %v307 = vld [vmem:[#allocation7 + $0x40] sm:$0xff]
        %v308 = vld [vmem:[#allocation7 + $0x48] sm:$0xff]
        %v309 = vld [vmem:[#allocation7 + $0x50] sm:$0xff]
        %v310 = vld [vmem:[#allocation7 + $0x58] sm:$0xff]
        %v311 = vld [vmem:[#allocation7 + $0x60] sm:$0xff]
        %v312 = vld [vmem:[#allocation7 + $0x68] sm:$0xff]
        %v313 = vld [vmem:[#allocation7 + $0x70] sm:$0xff]
        %v314 = vld [vmem:[#allocation7 + $0x78] sm:$0xff]
        %315 = vmatpush.msra.mxu0 %v314
        %316 = vmatpush.msra.mxu0 %v313
        %317 = vmatpush.msra.mxu0 %v312
        %318 = vmatpush.msra.mxu0 %v311
        %319 = vmatpush.msra.mxu0 %v310
        %320 = vmatpush.msra.mxu0 %v309
        %321 = vmatpush.msra.mxu0 %v308
        %322 = vmatpush.msra.mxu0 %v307
        %323 = vmatpush.msra.mxu0 %v306
        %324 = vmatpush.msra.mxu0 %v305
        %325 = vmatpush.msra.mxu0 %v304
        %326 = vmatpush.msra.mxu0 %v303
        %327 = vmatpush.msra.mxu0 %v302
        %328 = vmatpush.msra.mxu0 %v301
        %329 = vmatpush.msra.mxu0 %v300
        %330 = vmatpush.msra.mxu0 %v299
        %331 = vmatmul.f32.gmra.mxu0 %v297
        %v332 = vpop.f32.mrf.mxu0
        %v333 = vadd.f32 0.0, %v332
        %334 = vdwg.mxu0
        %335 = vst [vmem:[%s258] sm:$0xff] %v333
        %s336 = sand.u32 %s102, 1
        %s337 = scalar_lea.sflag [#allocation4], %s336
        %s338 = sand.u32 %s102, 1
        %s339 = smul.addr %s338, 8
        %s340 = scalar_lea.vmem [#allocation8], %s339
        %s341 = sand.u32 %s128, 1
        %s342 = scalar_lea.sflag [#allocation10], %s341
        %s343 = sand.u32 %s128, 1
        %s344 = smul.addr %s343, 8
        %s345 = scalar_lea.vmem [#allocation9], %s344
        // Predicated region
        $region45: #{tpu_custom_call.1} parent=31 // pred_check
          %p346 = pneg %p112
        $region46: #{tpu_custom_call.1} parent=31 // pred_check_branch
          %348 = sbr.rel (%p346) target = $region48
        $region47: #{tpu_custom_call.1} parent=31 // pred_region
          %350 = vsyncadd %s337, 0
          %s351 = smul.addr %s26, 8
          %s352 = scalar_lea.hbm %s3, %s351
          %s354 = sshll.u32 %s340, 4
          %s355 = int_to_ptr.vmem [resolvable:$true] %s354
          %s356 = sshll.u32 %s352, 4
          %s357 = int_to_ptr.hbm [resolvable:$true] %s356
          %359 = dma.vmem_to_hbm [thread:$0]  %s355, 128, %s357, %s337
        $region48: #{tpu_custom_call.1} parent=31 // pred_fallthru
          _
        // Predicated region
        $region49: #{tpu_custom_call.1} parent=31 // pred_check
          %p360 = pneg %p138
        $region50: #{tpu_custom_call.1} parent=31 // pred_check_branch
          %362 = sbr.rel (%p360) target = $region52
        $region51: #{tpu_custom_call.1} parent=31 // pred_region
          %364 = vsyncadd %s342, 0
          %s365 = smul.addr %s26, 8
          %s366 = scalar_lea.hbm %s4, %s365
          %s368 = sshll.u32 %s345, 4
          %s369 = int_to_ptr.vmem [resolvable:$true] %s368
          %s370 = sshll.u32 %s366, 4
          %s371 = int_to_ptr.hbm [resolvable:$true] %s370
          %373 = dma.vmem_to_hbm [thread:$0]  %s369, 128, %s371, %s342
        $region52: #{tpu_custom_call.1} parent=31 // pred_fallthru
          _
      $region32: #{tpu_custom_call.1} parent=5 // pred_fallthru
        _
      %p374 = scmp.le.s32.totalorder 2, %s21
      // Predicated region
      $region53: #{tpu_custom_call.1} parent=5 // pred_check
        %p375 = pneg %p374
      $region54: #{tpu_custom_call.1} parent=5 // pred_check_branch
        %377 = sbr.rel (%p375) target = $region56
      $region55: #{tpu_custom_call.1} parent=5 // pred_region
        %s378 = ssub.s32 %s21, 2
        // Predicated region
        $region57: #{tpu_custom_call.1} parent=55 // pred_check
          %p379 = pneg %p118
        $region58: #{tpu_custom_call.1} parent=55 // pred_check_branch
          %381 = sbr.rel (%p379) target = $region60
        $region59: #{tpu_custom_call.1} parent=55 // pred_region
          %s382 = sand.u32 %s103, 1
          %s383 = scalar_lea.sflag [#allocation4], %s382
          %s384 = sand.u32 %s103, 1
          %s385 = smul.addr %s384, 8
          %s386 = scalar_lea.vmem [#allocation8], %s385
          %388 = dma.done %s383, 128
        $region60: #{tpu_custom_call.1} parent=55 // pred_fallthru
          _
        // Predicated region
        $region61: #{tpu_custom_call.1} parent=55 // pred_check
          %p389 = pneg %p144
        $region62: #{tpu_custom_call.1} parent=55 // pred_check_branch
          %391 = sbr.rel (%p389) target = $region64
        $region63: #{tpu_custom_call.1} parent=55 // pred_region
          %s392 = sand.u32 %s129, 1
          %s393 = scalar_lea.sflag [#allocation10], %s392
          %s394 = sand.u32 %s129, 1
          %s395 = smul.addr %s394, 8
          %s396 = scalar_lea.vmem [#allocation9], %s395
          %398 = dma.done %s393, 128
        $region64: #{tpu_custom_call.1} parent=55 // pred_fallthru
          _
      $region56: #{tpu_custom_call.1} parent=5 // pred_fallthru
        _
    $region6: #{tpu_custom_call.1} parent=1 // loop_footer
      %s25 = sadd.s32 1, %s21
    $region7: #{tpu_custom_call.1} parent=1 // loop_footer_branch
      %20 = sbr.rel target = $region3
    $region8: #{tpu_custom_call.1} parent=1 // loop_exit
      _
    %399 = vsyncpa [#allocation3], 1
    %s400 = scalar_lea.sflag [#allocation3], 1
    %401 = vsyncpa %s400, 1
    %402 = vsyncpa [#allocation6], 1
    %403 = vsyncpa [#allocation4], 1
    %s404 = scalar_lea.sflag [#allocation4], 1
    %405 = vsyncpa %s404, 1
    %406 = vsyncpa [#allocation10], 1
    %s407 = scalar_lea.sflag [#allocation10], 1
    %408 = vsyncpa %s407, 1

</llo_original>
